<compile_context>
chip_gen: v7x
topology: tpu7x:2x2x1
jax: 0.10.0
libtpu: 0.0.40
codegen_flags: <defaults>
</compile_context>

<pallas_src>
import functools
import math

import jax
import jax.numpy as jnp
from jax.experimental import pallas as pl
from jax.experimental.pallas import tpu as pltpu

LOG_STD_MAX = 2.0
LOG_STD_MIN = -20.0
HALF_LOG_2PI = 0.5 * math.log(2.0 * math.pi)


def _actor_kernel(obs_ref, *rest, act_limit, deterministic, out_w):
    if deterministic:
        (w1_ref, b1_ref, w2_ref, b2_ref,
         w3m_ref, b3m_ref, w3s_ref, b3s_ref, out_ref) = rest
        eps_ref = None
    else:
        (eps_ref, w1_ref, b1_ref, w2_ref, b2_ref,
         w3m_ref, b3m_ref, w3s_ref, b3s_ref, out_ref) = rest

    # ---- MLP: bf16 operands on the MXU, f32 accumulation, f32 elementwise ----
    obs = obs_ref[...].astype(jnp.bfloat16)
    h1 = jnp.dot(obs, w1_ref[...], preferred_element_type=jnp.float32) + b1_ref[...]
    h1 = jnp.maximum(h1, 0.0)
    h2 = jnp.dot(h1.astype(jnp.bfloat16), w2_ref[...],
                 preferred_element_type=jnp.float32) + b2_ref[...]
    h2 = jnp.maximum(h2, 0.0).astype(jnp.bfloat16)

    # Split head: two lane-aligned matmuls (== torch.chunk of the fused head).
    mean = jnp.dot(h2, w3m_ref[...], preferred_element_type=jnp.float32) + b3m_ref[...]
    log_std = jnp.dot(h2, w3s_ref[...], preferred_element_type=jnp.float32) + b3s_ref[...]
    log_std = jnp.clip(log_std, LOG_STD_MIN, LOG_STD_MAX)

    if deterministic:
        x = mean
        normal_logp = -log_std - HALF_LOG_2PI
    else:
        std = jnp.exp(log_std)           # only needed on the stochastic path
        eps = eps_ref[...]
        x = mean + eps * std
        # z = (x - mean)/std == eps analytically -> no subtract/divide needed.
        normal_logp = -0.5 * eps * eps - log_std - HALF_LOG_2PI

    pi = jnp.tanh(x)
    # Spec formula: log_prob(x) - log(1 - tanh(x)^2 + 1e-6)
    logp = normal_logp - jnp.log(1.0 - pi * pi + 1e-6)
    logp_sum = jnp.sum(logp, axis=1, keepdims=True)
    act = act_limit * pi

    # Fused lane-contiguous output slab: [act (act_dim lanes) | logp (1) | pad].
    act_dim = act.shape[1]
    pad_w = out_w - act_dim - 1
    pieces = [act, logp_sum]
    if pad_w > 0:
        pieces.append(jnp.zeros((act.shape[0], pad_w), jnp.float32))
    out_ref[...] = jnp.concatenate(pieces, axis=-1)


def _default_num_tiles():
    """Grid steps: 1 on single-TC chips (v5e/v6e, CPU interpret), 2 on v7x."""
    try:
        kind = jax.devices()[0].device_kind.lower()
    except Exception:
        return 1
    return 2 if "v7" in kind else 1


def actor_forward(obs, params, act_dim, act_limit=1.0, deterministic=False,
                  eps=None, num_tiles=None):
    """SAC Actor forward (with_logprob=True). Returns (pi_action, logp_pi)."""
    w1, b1, w2, b2, w3m, b3m, w3s, b3s = params
    batch, obs_dim = obs.shape
    hidden = w1.shape[1]
    out_w = max(8, pl.cdiv(act_dim + 1, 8) * 8)   # fused act|logp|pad slab width

    if num_tiles is None:
        num_tiles = _default_num_tiles()
    num_tiles = max(1, int(num_tiles))
    tile_b = pl.cdiv(pl.cdiv(batch, num_tiles), 8) * 8
    padded = tile_b * num_tiles
    if padded != batch:
        obs = jnp.pad(obs, ((0, padded - batch), (0, 0)))

    inputs = [obs]
    in_specs = [pl.BlockSpec((tile_b, obs_dim), lambda i: (i, 0))]   # streamed
    if not deterministic:
        if eps is None:
            raise ValueError("stochastic forward needs reparameterization noise `eps`")
        eps = jnp.asarray(eps, jnp.float32)
        if eps.shape[0] != padded:
            eps = jnp.pad(eps, ((0, padded - eps.shape[0]), (0, 0)))
        inputs.append(eps)
        in_specs.append(pl.BlockSpec((tile_b, act_dim), lambda i: (i, 0)))

    def wspec(shape):   # VMEM-resident weights/biases (constant block index)
        return pl.BlockSpec(shape, lambda i: (0, 0))

    inputs += [w1, b1, w2, b2, w3m, b3m, w3s, b3s]
    in_specs += [wspec((obs_dim, hidden)), wspec((1, hidden)),
                 wspec((hidden, hidden)), wspec((1, hidden)),
                 wspec((hidden, act_dim)), wspec((1, act_dim)),
                 wspec((hidden, act_dim)), wspec((1, act_dim))]

    kernel = functools.partial(_actor_kernel, act_limit=float(act_limit),
                               deterministic=bool(deterministic), out_w=out_w)

    flops = 2 * padded * hidden * (obs_dim + hidden + 2 * act_dim)
    transcendentals = 5 * padded * act_dim
    bytes_accessed = (int(obs.size) * obs.dtype.itemsize
                      + sum(int(p.size) * p.dtype.itemsize for p in params)
                      + (0 if deterministic else padded * act_dim * 4)
                      + padded * out_w * 4)

    fused = pl.pallas_call(
        kernel,
        out_shape=jax.ShapeDtypeStruct((padded, out_w), jnp.float32),
        grid=(num_tiles,),
        in_specs=in_specs,
        out_specs=pl.BlockSpec((tile_b, out_w), lambda i: (i, 0)),
        compiler_params=pltpu.CompilerParams(
            dimension_semantics=("parallel",),   # independent batch tiles
        ),
        cost_estimate=pl.CostEstimate(flops=flops,
                                      transcendentals=transcendentals,
                                      bytes_accessed=bytes_accessed),
    )(*inputs)

    act = fused[:batch, :act_dim]
    logp = fused[:batch, act_dim:act_dim + 1]
    return act, logp


def init_params(key, obs_dim, act_dim, hidden_dim):
    """Synthetic params: weights stored bf16 (MXU operands), biases f32, (1, n)."""
    ks = jax.random.split(key, 8)
    s1 = 1.0 / math.sqrt(obs_dim)
    s2 = 1.0 / math.sqrt(hidden_dim)

    def u(k, shape, s):
        return jax.random.uniform(k, shape, jnp.float32, -s, s)

    w1 = u(ks[0], (obs_dim, hidden_dim), s1).astype(jnp.bfloat16)
    b1 = u(ks[1], (1, hidden_dim), s1)
    w2 = u(ks[2], (hidden_dim, hidden_dim), s2).astype(jnp.bfloat16)
    b2 = u(ks[3], (1, hidden_dim), s2)
    w3m = u(ks[4], (hidden_dim, act_dim), s2).astype(jnp.bfloat16)    # mean head
    b3m = u(ks[5], (1, act_dim), s2)
    w3s = u(ks[6], (hidden_dim, act_dim), s2).astype(jnp.bfloat16)    # log_std head
    b3s = u(ks[7], (1, act_dim), s2)
    return (w1, b1, w2, b2, w3m, b3m, w3s, b3s)


def actor_forward_ref(obs, params, act_limit=1.0, eps=None):
    """Pure-JAX reference with identical math (bf16 matmul operands, f32 rest)."""
    w1, b1, w2, b2, w3m, b3m, w3s, b3s = params
    bf16, f32 = jnp.bfloat16, jnp.float32
    h1 = jnp.maximum(jnp.dot(obs.astype(bf16), w1, preferred_element_type=f32) + b1, 0.0)
    h2 = jnp.maximum(jnp.dot(h1.astype(bf16), w2, preferred_element_type=f32) + b2, 0.0)
    h2 = h2.astype(bf16)
    mean = jnp.dot(h2, w3m, preferred_element_type=f32) + b3m
    log_std = jnp.clip(jnp.dot(h2, w3s, preferred_element_type=f32) + b3s,
                       LOG_STD_MIN, LOG_STD_MAX)
    if eps is None:
        x = mean
        normal_logp = -log_std - HALF_LOG_2PI
    else:
        std = jnp.exp(log_std)
        x = mean + eps * std
        normal_logp = -0.5 * eps * eps - log_std - HALF_LOG_2PI
    pi = jnp.tanh(x)
    logp = normal_logp - jnp.log(1.0 - pi * pi + 1e-6)
    return act_limit * pi, jnp.sum(logp, axis=1, keepdims=True)


if __name__ == "__main__":
    obs_dim, act_dim, hidden_dim = 16, 4, 128   # hidden kept lane-friendly (128)
    batch = 64
    act_limit = 1.0

    key = jax.random.PRNGKey(0)
    k_obs, k_par, k_eps = jax.random.split(key, 3)
    obs = jax.random.normal(k_obs, (batch, obs_dim), jnp.float32)
    params = init_params(k_par, obs_dim, act_dim, hidden_dim)
    eps = jax.random.normal(k_eps, (batch, act_dim), jnp.float32)

    # --- deterministic path (pi_action_normal = mean) ---
    pi_det, logp_det = actor_forward(obs, params, act_dim, act_limit,
                                     deterministic=True)
    jax.block_until_ready((pi_det, logp_det))
    pi_ref, logp_ref = actor_forward_ref(obs, params, act_limit, eps=None)
    assert pi_det.shape == (batch, act_dim) and logp_det.shape == (batch, 1)
    assert jnp.allclose(pi_det, pi_ref, atol=5e-3), \
        float(jnp.max(jnp.abs(pi_det - pi_ref)))
    assert jnp.allclose(logp_det, logp_ref, atol=5e-2), \
        float(jnp.max(jnp.abs(logp_det - logp_ref)))

    # --- stochastic path (rsample: x = mean + eps * std, eps streamed in) ---
    pi_s, logp_s = actor_forward(obs, params, act_dim, act_limit,
                                 deterministic=False, eps=eps)
    jax.block_until_ready((pi_s, logp_s))
    pi_sref, logp_sref = actor_forward_ref(obs, params, act_limit, eps=eps)
    assert pi_s.shape == (batch, act_dim) and logp_s.shape == (batch, 1)
    assert jnp.allclose(pi_s, pi_sref, atol=5e-3), \
        float(jnp.max(jnp.abs(pi_s - pi_sref)))
    assert jnp.allclose(logp_s, logp_sref, atol=5e-2), \
        float(jnp.max(jnp.abs(logp_s - logp_sref)))
    assert bool(jnp.all(jnp.abs(pi_s) <= act_limit + 1e-6))
    assert bool(jnp.all(jnp.isfinite(logp_s)))

    print("KERNEL_OK")
</pallas_src>

<mosaic_0001>
module attributes {stable_mosaic.version = 11 : i64} {
  func.func @_actor_kernel(%arg0: i32, %arg1: memref<64x16xf32, #tpu.memory_space<vmem>>, %arg2: memref<16x128xbf16, #tpu.memory_space<vmem>>, %arg3: memref<1x128xf32, #tpu.memory_space<vmem>>, %arg4: memref<128x128xbf16, #tpu.memory_space<vmem>>, %arg5: memref<1x128xf32, #tpu.memory_space<vmem>>, %arg6: memref<128x4xbf16, #tpu.memory_space<vmem>>, %arg7: memref<1x4xf32, #tpu.memory_space<vmem>>, %arg8: memref<128x4xbf16, #tpu.memory_space<vmem>>, %arg9: memref<1x4xf32, #tpu.memory_space<vmem>>, %arg10: memref<64x8xf32, #tpu.memory_space<vmem>>) attributes {dimension_semantics = [#tpu.dimension_semantics<parallel>], iteration_bounds = array<i64: 1>, scalar_prefetch = 0 : i64, scratch_operands = 0 : i64, tpu.core_type = #tpu.core_type<tc>, window_params = [{transform_indices = @transform_0, window_bounds = array<i64: 64, 16>}, {pipeline_mode = #tpu.pipeline_mode<synchronous>, transform_indices = @transform_1, window_bounds = array<i64: 16, 128>}, {pipeline_mode = #tpu.pipeline_mode<synchronous>, transform_indices = @transform_2, window_bounds = array<i64: 1, 128>}, {pipeline_mode = #tpu.pipeline_mode<synchronous>, transform_indices = @transform_3, window_bounds = array<i64: 128, 128>}, {pipeline_mode = #tpu.pipeline_mode<synchronous>, transform_indices = @transform_4, window_bounds = array<i64: 1, 128>}, {pipeline_mode = #tpu.pipeline_mode<synchronous>, transform_indices = @transform_5, window_bounds = array<i64: 128, 4>}, {pipeline_mode = #tpu.pipeline_mode<synchronous>, transform_indices = @transform_6, window_bounds = array<i64: 1, 4>}, {pipeline_mode = #tpu.pipeline_mode<synchronous>, transform_indices = @transform_7, window_bounds = array<i64: 128, 4>}, {pipeline_mode = #tpu.pipeline_mode<synchronous>, transform_indices = @transform_8, window_bounds = array<i64: 1, 4>}, {transform_indices = @transform_9, window_bounds = array<i64: 64, 8>}]} {
    %c0 = arith.constant 0 : index
    %c0_0 = arith.constant 0 : index
    %0 = vector.load %arg1[%c0, %c0_0] : memref<64x16xf32, #tpu.memory_space<vmem>>, vector<64x16xf32>
    %1 = arith.truncf %0 : vector<64x16xf32> to vector<64x16xbf16>
    %c0_1 = arith.constant 0 : index
    %c0_2 = arith.constant 0 : index
    %2 = vector.load %arg2[%c0_1, %c0_2] : memref<16x128xbf16, #tpu.memory_space<vmem>>, vector<16x128xbf16>
    %cst = arith.constant dense<0.000000e+00> : vector<64x128xf32>
    %3 = tpu.matmul %1, %2, %cst {dimension_numbers = #tpu.dot_dimension_numbers<[1], [0], [0], [1], [0, 0, 1, 1], [], []>} : vector<64x16xbf16>, vector<16x128xbf16>, vector<64x128xf32> -> vector<64x128xf32>
    %c0_3 = arith.constant 0 : index
    %c0_4 = arith.constant 0 : index
    %4 = vector.load %arg3[%c0_3, %c0_4] : memref<1x128xf32, #tpu.memory_space<vmem>>, vector<1x128xf32>
    %5 = vector.broadcast %4 : vector<1x128xf32> to vector<64x128xf32>
    %6 = arith.addf %3, %5 : vector<64x128xf32>
    %cst_5 = arith.constant 0.000000e+00 : f32
    %7 = vector.broadcast %cst_5 : f32 to vector<64x128xf32>
    %8 = arith.maximumf %6, %7 : vector<64x128xf32>
    %9 = arith.truncf %8 : vector<64x128xf32> to vector<64x128xbf16>
    %c0_6 = arith.constant 0 : index
    %c0_7 = arith.constant 0 : index
    %10 = vector.load %arg4[%c0_6, %c0_7] : memref<128x128xbf16, #tpu.memory_space<vmem>>, vector<128x128xbf16>
    %cst_8 = arith.constant dense<0.000000e+00> : vector<64x128xf32>
    %11 = tpu.matmul %9, %10, %cst_8 {dimension_numbers = #tpu.dot_dimension_numbers<[1], [0], [0], [1], [0, 0, 1, 1], [], []>} : vector<64x128xbf16>, vector<128x128xbf16>, vector<64x128xf32> -> vector<64x128xf32>
    %c0_9 = arith.constant 0 : index
    %c0_10 = arith.constant 0 : index
    %12 = vector.load %arg5[%c0_9, %c0_10] : memref<1x128xf32, #tpu.memory_space<vmem>>, vector<1x128xf32>
    %13 = vector.broadcast %12 : vector<1x128xf32> to vector<64x128xf32>
    %14 = arith.addf %11, %13 : vector<64x128xf32>
    %cst_11 = arith.constant 0.000000e+00 : f32
    %15 = vector.broadcast %cst_11 : f32 to vector<64x128xf32>
    %16 = arith.maximumf %14, %15 : vector<64x128xf32>
    %17 = arith.truncf %16 : vector<64x128xf32> to vector<64x128xbf16>
    %c0_12 = arith.constant 0 : index
    %c0_13 = arith.constant 0 : index
    %18 = vector.load %arg6[%c0_12, %c0_13] : memref<128x4xbf16, #tpu.memory_space<vmem>>, vector<128x4xbf16>
    %cst_14 = arith.constant dense<0.000000e+00> : vector<64x4xf32>
    %19 = tpu.matmul %17, %18, %cst_14 {dimension_numbers = #tpu.dot_dimension_numbers<[1], [0], [0], [1], [0, 0, 1, 1], [], []>} : vector<64x128xbf16>, vector<128x4xbf16>, vector<64x4xf32> -> vector<64x4xf32>
    %c0_15 = arith.constant 0 : index
    %c0_16 = arith.constant 0 : index
    %20 = vector.load %arg7[%c0_15, %c0_16] : memref<1x4xf32, #tpu.memory_space<vmem>>, vector<1x4xf32>
    %21 = vector.broadcast %20 : vector<1x4xf32> to vector<64x4xf32>
    %22 = arith.addf %19, %21 : vector<64x4xf32>
    %c0_17 = arith.constant 0 : index
    %c0_18 = arith.constant 0 : index
    %23 = vector.load %arg8[%c0_17, %c0_18] : memref<128x4xbf16, #tpu.memory_space<vmem>>, vector<128x4xbf16>
    %cst_19 = arith.constant dense<0.000000e+00> : vector<64x4xf32>
    %24 = tpu.matmul %17, %23, %cst_19 {dimension_numbers = #tpu.dot_dimension_numbers<[1], [0], [0], [1], [0, 0, 1, 1], [], []>} : vector<64x128xbf16>, vector<128x4xbf16>, vector<64x4xf32> -> vector<64x4xf32>
    %c0_20 = arith.constant 0 : index
    %c0_21 = arith.constant 0 : index
    %25 = vector.load %arg9[%c0_20, %c0_21] : memref<1x4xf32, #tpu.memory_space<vmem>>, vector<1x4xf32>
    %26 = vector.broadcast %25 : vector<1x4xf32> to vector<64x4xf32>
    %27 = arith.addf %24, %26 : vector<64x4xf32>
    %cst_22 = arith.constant -2.000000e+01 : f32
    %cst_23 = arith.constant 2.000000e+00 : f32
    %28 = vector.broadcast %cst_22 : f32 to vector<64x4xf32>
    %29 = arith.maximumf %28, %27 : vector<64x4xf32>
    %30 = vector.broadcast %cst_23 : f32 to vector<64x4xf32>
    %31 = arith.minimumf %30, %29 : vector<64x4xf32>
    %cst_24 = arith.constant 0.000000e+00 : f32
    %32 = vector.broadcast %cst_24 : f32 to vector<64x4xf32>
    %33 = arith.subf %32, %31 : vector<64x4xf32>
    %cst_25 = arith.constant 0.918938517 : f32
    %34 = vector.broadcast %cst_25 : f32 to vector<64x4xf32>
    %35 = arith.subf %33, %34 : vector<64x4xf32>
    %36 = math.tanh %22 : vector<64x4xf32>
    %37 = arith.mulf %36, %36 : vector<64x4xf32>
    %cst_26 = arith.constant 1.000000e+00 : f32
    %38 = vector.broadcast %cst_26 : f32 to vector<64x4xf32>
    %39 = arith.subf %38, %37 : vector<64x4xf32>
    %cst_27 = arith.constant 9.99999997E-7 : f32
    %40 = vector.broadcast %cst_27 : f32 to vector<64x4xf32>
    %41 = arith.addf %39, %40 : vector<64x4xf32>
    %42 = math.log %41 : vector<64x4xf32>
    %43 = arith.subf %35, %42 : vector<64x4xf32>
    %cst_28 = arith.constant dense<0.000000e+00> : vector<64xf32>
    %44 = vector.multi_reduction <add>, %43, %cst_28 [1] : vector<64x4xf32> to vector<64xf32>
    %45 = vector.shape_cast %44 : vector<64xf32> to vector<64x1xf32>
    %cst_29 = arith.constant 1.000000e+00 : f32
    %46 = vector.broadcast %cst_29 : f32 to vector<64x4xf32>
    %47 = arith.mulf %46, %36 : vector<64x4xf32>
    %cst_30 = arith.constant 0.000000e+00 : f32
    %48 = vector.broadcast %cst_30 : f32 to vector<64x3xf32>
    %49 = tpu.concatenate %47, %45, %48 in 1 : vector<64x4xf32>, vector<64x1xf32>, vector<64x3xf32> -> vector<64x8xf32>
    %c0_31 = arith.constant 0 : index
    %c0_32 = arith.constant 0 : index
    %50 = vector.load %arg10[%c0_31, %c0_32] : memref<64x8xf32, #tpu.memory_space<vmem>>, vector<64x8xf32>
    tpu.vector_store %arg10[%c0_31, %c0_32], %49 {strides = array<i32>} : memref<64x8xf32, #tpu.memory_space<vmem>>, vector<64x8xf32>,
    return
  }
  func.func @transform_0(%arg0: i32) -> (i32, i32) {
    %c0_i32 = arith.constant 0 : i32
    %c0_i32_0 = arith.constant 0 : i32
    return %arg0, %c0_i32 : i32, i32
  }
  func.func @transform_1(%arg0: i32) -> (i32, i32) {
    %c0_i32 = arith.constant 0 : i32
    %c0_i32_0 = arith.constant 0 : i32
    %c0_i32_1 = arith.constant 0 : i32
    return %c0_i32, %c0_i32_0 : i32, i32
  }
  func.func @transform_2(%arg0: i32) -> (i32, i32) {
    %c0_i32 = arith.constant 0 : i32
    %c0_i32_0 = arith.constant 0 : i32
    %c0_i32_1 = arith.constant 0 : i32
    return %c0_i32, %c0_i32_0 : i32, i32
  }
  func.func @transform_3(%arg0: i32) -> (i32, i32) {
    %c0_i32 = arith.constant 0 : i32
    %c0_i32_0 = arith.constant 0 : i32
    %c0_i32_1 = arith.constant 0 : i32
    return %c0_i32, %c0_i32_0 : i32, i32
  }
  func.func @transform_4(%arg0: i32) -> (i32, i32) {
    %c0_i32 = arith.constant 0 : i32
    %c0_i32_0 = arith.constant 0 : i32
    %c0_i32_1 = arith.constant 0 : i32
    return %c0_i32, %c0_i32_0 : i32, i32
  }
  func.func @transform_5(%arg0: i32) -> (i32, i32) {
    %c0_i32 = arith.constant 0 : i32
    %c0_i32_0 = arith.constant 0 : i32
    %c0_i32_1 = arith.constant 0 : i32
    return %c0_i32, %c0_i32_0 : i32, i32
  }
  func.func @transform_6(%arg0: i32) -> (i32, i32) {
    %c0_i32 = arith.constant 0 : i32
    %c0_i32_0 = arith.constant 0 : i32
    %c0_i32_1 = arith.constant 0 : i32
    return %c0_i32, %c0_i32_0 : i32, i32
  }
  func.func @transform_7(%arg0: i32) -> (i32, i32) {
    %c0_i32 = arith.constant 0 : i32
    %c0_i32_0 = arith.constant 0 : i32
    %c0_i32_1 = arith.constant 0 : i32
    return %c0_i32, %c0_i32_0 : i32, i32
  }
  func.func @transform_8(%arg0: i32) -> (i32, i32) {
    %c0_i32 = arith.constant 0 : i32
    %c0_i32_0 = arith.constant 0 : i32
    %c0_i32_1 = arith.constant 0 : i32
    return %c0_i32, %c0_i32_0 : i32, i32
  }
  func.func @transform_9(%arg0: i32) -> (i32, i32) {
    %c0_i32 = arith.constant 0 : i32
    %c0_i32_0 = arith.constant 0 : i32
    return %arg0, %c0_i32 : i32, i32
  }
}

</mosaic_0001>

<llo_original>
// kernel: tpu_custom_call.1
$region0: #{tpu_custom_call.1}
  #allocation0 [shape = 'u32[]', space=smem, size = 0x4, offset = 0x4, fixed_abs, tag = 'smem constant byte address 0x4 - core index']
  #allocation1 [shape = 'u32[144,128]{1,0:T(1,128)}', space=vmem, size = 0x12000, scoped, tag = 'internal scratch']
  %s0 = inlined_call_operand.vmem [shape: f32[64,16], index: 0, kind: input, shape index: {}]
  %s1 = inlined_call_operand.vmem [shape: bf16[16,128], index: 1, kind: input, shape index: {}]
  %s2 = inlined_call_operand.vmem [shape: f32[1,128], index: 2, kind: input, shape index: {}]
  %s3 = inlined_call_operand.vmem [shape: bf16[128,128], index: 3, kind: input, shape index: {}]
  %s4 = inlined_call_operand.vmem [shape: f32[1,128], index: 4, kind: input, shape index: {}]
  %s5 = inlined_call_operand.vmem [shape: bf16[128,4], index: 5, kind: input, shape index: {}]
  %s6 = inlined_call_operand.vmem [shape: f32[1,4], index: 6, kind: input, shape index: {}]
  %s7 = inlined_call_operand.vmem [shape: bf16[128,4], index: 7, kind: input, shape index: {}]
  %s8 = inlined_call_operand.vmem [shape: f32[1,4], index: 8, kind: input, shape index: {}]
  %s9 = inlined_call_operand.vmem [shape: f32[64,8], index: 9, kind: output, shape index: {}]
  %s10 = sld [smem:[#allocation0]]
  $region46: #{tpu_custom_call.1} parent=0
    _
  %s12 = ssub.s32 1, %s10
  %s13 = scalar_select 0, %s12, %s10
  // Predicated region
  $region2: #{tpu_custom_call.1} parent=0 // pred_check
    _
  $region3: #{tpu_custom_call.1} parent=0 // pred_check_branch
    %15 = sbr.rel (0) target = $region5
  $region4: #{tpu_custom_call.1} parent=0 // pred_region
    _
  $region5: #{tpu_custom_call.1} parent=0 // pred_fallthru
    _
  // Predicated region
  $region6: #{tpu_custom_call.1} parent=0 // pred_check
    _
  $region7: #{tpu_custom_call.1} parent=0 // pred_check_branch
    %17 = sbr.rel (0) target = $region9
  $region8: #{tpu_custom_call.1} parent=0 // pred_region
    _
  $region9: #{tpu_custom_call.1} parent=0 // pred_fallthru
    _
  // Predicated region
  $region10: #{tpu_custom_call.1} parent=0 // pred_check
    _
  $region11: #{tpu_custom_call.1} parent=0 // pred_check_branch
    %19 = sbr.rel (0) target = $region13
  $region12: #{tpu_custom_call.1} parent=0 // pred_region
    _
  $region13: #{tpu_custom_call.1} parent=0 // pred_fallthru
    _
  // Predicated region
  $region14: #{tpu_custom_call.1} parent=0 // pred_check
    _
  $region15: #{tpu_custom_call.1} parent=0 // pred_check_branch
    %21 = sbr.rel (0) target = $region17
  $region16: #{tpu_custom_call.1} parent=0 // pred_region
    _
  $region17: #{tpu_custom_call.1} parent=0 // pred_fallthru
    _
  // Predicated region
  $region18: #{tpu_custom_call.1} parent=0 // pred_check
    _
  $region19: #{tpu_custom_call.1} parent=0 // pred_check_branch
    %23 = sbr.rel (0) target = $region21
  $region20: #{tpu_custom_call.1} parent=0 // pred_region
    _
  $region21: #{tpu_custom_call.1} parent=0 // pred_fallthru
    _
  // Predicated region
  $region22: #{tpu_custom_call.1} parent=0 // pred_check
    _
  $region23: #{tpu_custom_call.1} parent=0 // pred_check_branch
    %25 = sbr.rel (0) target = $region25
  $region24: #{tpu_custom_call.1} parent=0 // pred_region
    _
  $region25: #{tpu_custom_call.1} parent=0 // pred_fallthru
    _
  // Predicated region
  $region26: #{tpu_custom_call.1} parent=0 // pred_check
    _
  $region27: #{tpu_custom_call.1} parent=0 // pred_check_branch
    %27 = sbr.rel (0) target = $region29
  $region28: #{tpu_custom_call.1} parent=0 // pred_region
    _
  $region29: #{tpu_custom_call.1} parent=0 // pred_fallthru
    _
  // Predicated region
  $region30: #{tpu_custom_call.1} parent=0 // pred_check
    _
  $region31: #{tpu_custom_call.1} parent=0 // pred_check_branch
    %29 = sbr.rel (0) target = $region33
  $region32: #{tpu_custom_call.1} parent=0 // pred_region
    _
  $region33: #{tpu_custom_call.1} parent=0 // pred_fallthru
    _
  // Predicated region
  $region34: #{tpu_custom_call.1} parent=0 // pred_check
    _
  $region35: #{tpu_custom_call.1} parent=0 // pred_check_branch
    %31 = sbr.rel (0) target = $region37
  $region36: #{tpu_custom_call.1} parent=0 // pred_region
    _
  $region37: #{tpu_custom_call.1} parent=0 // pred_fallthru
    _
  %v33 = vld [vmem:[%s0] sm:$0xff]
  %v34 = vld [vmem:[%s0 + $0x8] sm:$0xff]
  %v35 = vld [vmem:[%s0 + $0x10] sm:$0xff]
  %v36 = vld [vmem:[%s0 + $0x18] sm:$0xff]
  %v37 = vld [vmem:[%s0 + $0x20] sm:$0xff]
  %v38 = vld [vmem:[%s0 + $0x28] sm:$0xff]
  %v39 = vld [vmem:[%s0 + $0x30] sm:$0xff]
  %v40 = vld [vmem:[%s0 + $0x38] sm:$0xff]
  %v41 = vpack.c.bf16 %v34, %v33
  %v42 = vpack.c.bf16 %v36, %v35
  %v43 = vpack.c.bf16 %v38, %v37
  %v44 = vpack.c.bf16 %v40, %v39
  %v45 = vld [vmem:[%s1] sm:$0xf]
  %v46 = vld [vmem:[%s1 + $0x4] sm:$0xf]
  %v47 = vld [vmem:[%s2] sm:$0x1]
  %v49 = vlaneseq
  %v50 = vshrl.u32 %v49, 7
  %v51 = vsub.s32 0, %v50
  %v52 = vrot.slane %v47, %v51
  %v56 = vunpack.c.l.b16 %v45
  %v57 = vunpack.c.l.b16 %v46
  %v58 = vpack.c.b16 %v57, %v56
  %vm60 = vcmask 130048
  %v62 = vsel %vm60, %v41, 0
  %v65 = vsel %vm60, %v42, 0
  %v68 = vsel %vm60, %v43, 0
  %v71 = vsel %vm60, %v44, 0
  %73 = vmatprep.subr.bf16.mxu0 0
  %74 = vmatpush1.bf16.msra.mxu0 %v58
  %75 = vmatprep.subr.bf16.mxu0 0
  %76 = vmatpush1.bf16.msra.mxu0 0
  %77 = vmatprep.subr.bf16.mxu0 0
  %78 = vmatpush1.bf16.msra.mxu0 0
  %79 = vmatprep.subr.bf16.mxu0 0
  %80 = vmatpush1.bf16.msra.mxu0 0
  %81 = vmatprep.subr.bf16.mxu0 0
  %82 = vmatpush1.bf16.msra.mxu0 0
  %83 = vmatprep.subr.bf16.mxu0 0
  %84 = vmatpush1.bf16.msra.mxu0 0
  %85 = vmatprep.subr.bf16.mxu0 0
  %86 = vmatpush1.bf16.msra.mxu0 0
  %87 = vmatprep.subr.bf16.mxu0 0
  %88 = vmatpush1.bf16.msra.mxu0 0
  %89 = vmatprep.subr.bf16.mxu0 0
  %90 = vmatpush1.bf16.msra.mxu0 0
  %91 = vmatprep.subr.bf16.mxu0 0
  %92 = vmatpush1.bf16.msra.mxu0 0
  %93 = vmatprep.subr.bf16.mxu0 0
  %94 = vmatpush1.bf16.msra.mxu0 0
  %95 = vmatprep.subr.bf16.mxu0 0
  %96 = vmatpush1.bf16.msra.mxu0 0
  %97 = vmatprep.subr.bf16.mxu0 0
  %98 = vmatpush1.bf16.msra.mxu0 0
  %99 = vmatprep.subr.bf16.mxu0 0
  %100 = vmatpush1.bf16.msra.mxu0 0
  %101 = vmatprep.subr.bf16.mxu0 0
  %102 = vmatpush1.bf16.msra.mxu0 0
  %103 = vmatprep.subr.bf16.mxu0 0
  %104 = vmatpush1.bf16.msra.mxu0 0
  %105 = vmatprep.mubr.bf16.mxu0 0
  %106 = vmatmul.mubr.bf16.gmra.mrb[0].mxu0 %v62
  %v107 = vpop.f32.mrb[0].mxu0
  %v108 = vadd.f32 %v52, %v107
  %v109 = vpop.f32.mrb[0].mxu0
  %v110 = vpop.f32.mrb[0].mxu0
  %v111 = vadd.f32 %v52, %v110
  %v112 = vpop.f32.mrb[0].mxu0
  %113 = vmatprep.mubr.bf16.mxu0 0
  %114 = vmatmul.mubr.bf16.gmra.mrb[0].mxu0 %v65
  %v115 = vpop.f32.mrb[0].mxu0
  %v116 = vadd.f32 %v52, %v115
  %v117 = vpop.f32.mrb[0].mxu0
  %v118 = vpop.f32.mrb[0].mxu0
  %v119 = vadd.f32 %v52, %v118
  %v120 = vpop.f32.mrb[0].mxu0
  %121 = vmatprep.mubr.bf16.mxu0 0
  %122 = vmatmul.mubr.bf16.gmra.mrb[0].mxu0 %v68
  %v123 = vpop.f32.mrb[0].mxu0
  %v124 = vadd.f32 %v52, %v123
  %v125 = vpop.f32.mrb[0].mxu0
  %v126 = vpop.f32.mrb[0].mxu0
  %v127 = vadd.f32 %v52, %v126
  %v128 = vpop.f32.mrb[0].mxu0
  %129 = vmatprep.mubr.bf16.mxu0 0
  %130 = vmatmul.mubr.bf16.gmra.mrb[0].mxu0 %v71
  %v131 = vpop.f32.mrb[0].mxu0
  %v132 = vadd.f32 %v52, %v131
  %v133 = vpop.f32.mrb[0].mxu0
  %v134 = vpop.f32.mrb[0].mxu0
  %v135 = vadd.f32 %v52, %v134
  %v136 = vpop.f32.mrb[0].mxu0
  %137 = vdwg.mxu0
  %v138 = vmax.f32 %v108, 0.0
  %v139 = vmax.f32 %v111, 0.0
  %v140 = vmax.f32 %v116, 0.0
  %v141 = vmax.f32 %v119, 0.0
  %v142 = vmax.f32 %v124, 0.0
  %v143 = vmax.f32 %v127, 0.0
  %v144 = vmax.f32 %v132, 0.0
  %v145 = vmax.f32 %v135, 0.0
  %v146 = vpack.c.bf16 %v139, %v138
  %v147 = vpack.c.bf16 %v141, %v140
  %v148 = vpack.c.bf16 %v143, %v142
  %v149 = vpack.c.bf16 %v145, %v144
  %v150 = vld [vmem:[%s3] sm:$0xf]
  %v151 = vld [vmem:[%s3 + $0x4] sm:$0xf]
  %v152 = vld [vmem:[%s3 + $0x8] sm:$0xf]
  %v153 = vld [vmem:[%s3 + $0xc] sm:$0xf]
  %v154 = vld [vmem:[%s3 + $0x10] sm:$0xf]
  %v155 = vld [vmem:[%s3 + $0x14] sm:$0xf]
  %v156 = vld [vmem:[%s3 + $0x18] sm:$0xf]
  %v157 = vld [vmem:[%s3 + $0x1c] sm:$0xf]
  %v158 = vld [vmem:[%s3 + $0x20] sm:$0xf]
  %v159 = vld [vmem:[%s3 + $0x24] sm:$0xf]
  %v160 = vld [vmem:[%s3 + $0x28] sm:$0xf]
  %v161 = vld [vmem:[%s3 + $0x2c] sm:$0xf]
  %v162 = vld [vmem:[%s3 + $0x30] sm:$0xf]
  %v163 = vld [vmem:[%s3 + $0x34] sm:$0xf]
  %v164 = vld [vmem:[%s3 + $0x38] sm:$0xf]
  %v165 = vld [vmem:[%s3 + $0x3c] sm:$0xf]
  %v166 = vld [vmem:[%s4] sm:$0x1]
  %v168 = vlaneseq
  %v169 = vshrl.u32 %v168, 7
  %v170 = vsub.s32 0, %v169
  %v171 = vrot.slane %v166, %v170
  %v189 = vunpack.c.l.b16 %v150
  %v190 = vunpack.c.l.b16 %v151
  %v191 = vunpack.c.l.b16 %v152
  %v192 = vunpack.c.l.b16 %v153
  %v193 = vunpack.c.l.b16 %v154
  %v194 = vunpack.c.l.b16 %v155
  %v195 = vunpack.c.l.b16 %v156
  %v196 = vunpack.c.l.b16 %v157
  %v197 = vunpack.c.l.b16 %v158
  %v198 = vunpack.c.l.b16 %v159
  %v199 = vunpack.c.l.b16 %v160
  %v200 = vunpack.c.l.b16 %v161
  %v201 = vunpack.c.l.b16 %v162
  %v202 = vunpack.c.l.b16 %v163
  %v203 = vunpack.c.l.b16 %v164
  %v204 = vunpack.c.l.b16 %v165
  %v205 = vpack.c.b16 %v190, %v189
  %v206 = vpack.c.b16 %v192, %v191
  %v207 = vpack.c.b16 %v194, %v193
  %v208 = vpack.c.b16 %v196, %v195
  %v209 = vpack.c.b16 %v198, %v197
  %v210 = vpack.c.b16 %v200, %v199
  %v211 = vpack.c.b16 %v202, %v201
  %v212 = vpack.c.b16 %v204, %v203
  %221 = vmatprep.subr.bf16.mxu0 0
  %222 = vmatpush1.bf16.msra.mxu0 %v205
  %223 = vmatprep.subr.bf16.mxu0 0
  %224 = vmatpush1.bf16.msra.mxu0 %v206
  %225 = vmatprep.subr.bf16.mxu0 0
  %226 = vmatpush1.bf16.msra.mxu0 %v207
  %227 = vmatprep.subr.bf16.mxu0 0
  %228 = vmatpush1.bf16.msra.mxu0 %v208
  %229 = vmatprep.subr.bf16.mxu0 0
  %230 = vmatpush1.bf16.msra.mxu0 %v209
  %231 = vmatprep.subr.bf16.mxu0 0
  %232 = vmatpush1.bf16.msra.mxu0 %v210
  %233 = vmatprep.subr.bf16.mxu0 0
  %234 = vmatpush1.bf16.msra.mxu0 %v211
  %235 = vmatprep.subr.bf16.mxu0 0
  %236 = vmatpush1.bf16.msra.mxu0 %v212
  %237 = vmatprep.subr.bf16.mxu0 0
  %238 = vmatpush1.bf16.msra.mxu0 0
  %239 = vmatprep.subr.bf16.mxu0 0
  %240 = vmatpush1.bf16.msra.mxu0 0
  %241 = vmatprep.subr.bf16.mxu0 0
  %242 = vmatpush1.bf16.msra.mxu0 0
  %243 = vmatprep.subr.bf16.mxu0 0
  %244 = vmatpush1.bf16.msra.mxu0 0
  %245 = vmatprep.subr.bf16.mxu0 0
  %246 = vmatpush1.bf16.msra.mxu0 0
  %247 = vmatprep.subr.bf16.mxu0 0
  %248 = vmatpush1.bf16.msra.mxu0 0
  %249 = vmatprep.subr.bf16.mxu0 0
  %250 = vmatpush1.bf16.msra.mxu0 0
  %251 = vmatprep.subr.bf16.mxu0 0
  %252 = vmatpush1.bf16.msra.mxu0 0
  %253 = vmatprep.mubr.bf16.mxu0 0
  %254 = vmatmul.mubr.bf16.gmra.mrb[0].mxu0 %v146
  %v255 = vpop.f32.mrb[0].mxu0
  %v256 = vadd.f32 %v171, %v255
  %v257 = vpop.f32.mrb[0].mxu0
  %v258 = vpop.f32.mrb[0].mxu0
  %v259 = vadd.f32 %v171, %v258
  %v260 = vpop.f32.mrb[0].mxu0
  %261 = vmatprep.mubr.bf16.mxu0 0
  %262 = vmatmul.mubr.bf16.gmra.mrb[0].mxu0 %v147
  %v263 = vpop.f32.mrb[0].mxu0
  %v264 = vadd.f32 %v171, %v263
  %v265 = vpop.f32.mrb[0].mxu0
  %v266 = vpop.f32.mrb[0].mxu0
  %v267 = vadd.f32 %v171, %v266
  %v268 = vpop.f32.mrb[0].mxu0
  %269 = vmatprep.mubr.bf16.mxu0 0
  %270 = vmatmul.mubr.bf16.gmra.mrb[0].mxu0 %v148
  %v271 = vpop.f32.mrb[0].mxu0
  %v272 = vadd.f32 %v171, %v271
  %v273 = vpop.f32.mrb[0].mxu0
  %v274 = vpop.f32.mrb[0].mxu0
  %v275 = vadd.f32 %v171, %v274
  %v276 = vpop.f32.mrb[0].mxu0
  %277 = vmatprep.mubr.bf16.mxu0 0
  %278 = vmatmul.mubr.bf16.gmra.mrb[0].mxu0 %v149
  %v279 = vpop.f32.mrb[0].mxu0
  %v280 = vadd.f32 %v171, %v279
  %v281 = vpop.f32.mrb[0].mxu0
  %v282 = vpop.f32.mrb[0].mxu0
  %v283 = vadd.f32 %v171, %v282
  %v284 = vpop.f32.mrb[0].mxu0
  %285 = vdwg.mxu0
  %v286 = vmax.f32 %v256, 0.0
  %v287 = vmax.f32 %v259, 0.0
  %v288 = vmax.f32 %v264, 0.0
  %v289 = vmax.f32 %v267, 0.0
  %v290 = vmax.f32 %v272, 0.0
  %v291 = vmax.f32 %v275, 0.0
  %v292 = vmax.f32 %v280, 0.0
  %v293 = vmax.f32 %v283, 0.0
  %v294 = vpack.c.bf16 %v287, %v286
  %v295 = vpack.c.bf16 %v289, %v288
  %v296 = vpack.c.bf16 %v291, %v290
  %v297 = vpack.c.bf16 %v293, %v292
  %v298 = vld [vmem:[%s5] sm:$0xf]
  %v299 = vld [vmem:[%s5 + $0x4] sm:$0xf]
  %v300 = vld [vmem:[%s5 + $0x8] sm:$0xf]
  %v301 = vld [vmem:[%s5 + $0xc] sm:$0xf]
  %v302 = vld [vmem:[%s5 + $0x10] sm:$0xf]
  %v303 = vld [vmem:[%s5 + $0x14] sm:$0xf]
  %v304 = vld [vmem:[%s5 + $0x18] sm:$0xf]
  %v305 = vld [vmem:[%s5 + $0x1c] sm:$0xf]
  %v306 = vld [vmem:[%s5 + $0x20] sm:$0xf]
  %v307 = vld [vmem:[%s5 + $0x24] sm:$0xf]
  %v308 = vld [vmem:[%s5 + $0x28] sm:$0xf]
  %v309 = vld [vmem:[%s5 + $0x2c] sm:$0xf]
  %v310 = vld [vmem:[%s5 + $0x30] sm:$0xf]
  %v311 = vld [vmem:[%s5 + $0x34] sm:$0xf]
  %v312 = vld [vmem:[%s5 + $0x38] sm:$0xf]
  %v313 = vld [vmem:[%s5 + $0x3c] sm:$0xf]
  %v314 = vld [vmem:[%s6] sm:$0x1]
  %v316 = vlaneseq
  %v317 = vshrl.u32 %v316, 7
  %v318 = vsub.s32 0, %v317
  %v319 = vrot.slane %v314, %v318
  %v337 = vunpack.c.l.b16 %v298
  %v338 = vunpack.c.l.b16 %v299
  %v339 = vunpack.c.l.b16 %v300
  %v340 = vunpack.c.l.b16 %v301
  %v341 = vunpack.c.l.b16 %v302
  %v342 = vunpack.c.l.b16 %v303
  %v343 = vunpack.c.l.b16 %v304
  %v344 = vunpack.c.l.b16 %v305
  %v345 = vunpack.c.l.b16 %v306
  %v346 = vunpack.c.l.b16 %v307
  %v347 = vunpack.c.l.b16 %v308
  %v348 = vunpack.c.l.b16 %v309
  %v349 = vunpack.c.l.b16 %v310
  %v350 = vunpack.c.l.b16 %v311
  %v351 = vunpack.c.l.b16 %v312
  %v352 = vunpack.c.l.b16 %v313
  %v353 = vpack.c.b16 %v338, %v337
  %v354 = vpack.c.b16 %v340, %v339
  %v355 = vpack.c.b16 %v342, %v341
  %v356 = vpack.c.b16 %v344, %v343
  %v357 = vpack.c.b16 %v346, %v345
  %v358 = vpack.c.b16 %v348, %v347
  %v359 = vpack.c.b16 %v350, %v349
  %v360 = vpack.c.b16 %v352, %v351
  %369 = vmatprep.subr.bf16.mxu0 0
  %370 = vmatpush1.bf16.msra.mxu0 %v353
  %371 = vmatprep.subr.bf16.mxu0 0
  %372 = vmatpush1.bf16.msra.mxu0 %v354
  %373 = vmatprep.subr.bf16.mxu0 0
  %374 = vmatpush1.bf16.msra.mxu0 %v355
  %375 = vmatprep.subr.bf16.mxu0 0
  %376 = vmatpush1.bf16.msra.mxu0 %v356
  %377 = vmatprep.subr.bf16.mxu0 0
  %378 = vmatpush1.bf16.msra.mxu0 %v357
  %379 = vmatprep.subr.bf16.mxu0 0
  %380 = vmatpush1.bf16.msra.mxu0 %v358
  %381 = vmatprep.subr.bf16.mxu0 0
  %382 = vmatpush1.bf16.msra.mxu0 %v359
  %383 = vmatprep.subr.bf16.mxu0 0
  %384 = vmatpush1.bf16.msra.mxu0 %v360
  %385 = vmatprep.subr.bf16.mxu0 0
  %386 = vmatpush1.bf16.msra.mxu0 0
  %387 = vmatprep.subr.bf16.mxu0 0
  %388 = vmatpush1.bf16.msra.mxu0 0
  %389 = vmatprep.subr.bf16.mxu0 0
  %390 = vmatpush1.bf16.msra.mxu0 0
  %391 = vmatprep.subr.bf16.mxu0 0
  %392 = vmatpush1.bf16.msra.mxu0 0
  %393 = vmatprep.subr.bf16.mxu0 0
  %394 = vmatpush1.bf16.msra.mxu0 0
  %395 = vmatprep.subr.bf16.mxu0 0
  %396 = vmatpush1.bf16.msra.mxu0 0
  %397 = vmatprep.subr.bf16.mxu0 0
  %398 = vmatpush1.bf16.msra.mxu0 0
  %399 = vmatprep.subr.bf16.mxu0 0
  %400 = vmatpush1.bf16.msra.mxu0 0
  %401 = vmatprep.mubr.bf16.mxu0 0
  %402 = vmatmul.mubr.bf16.gmra.mrb[0].mxu0 %v294
  %v403 = vpop.f32.mrb[0].mxu0
  %v404 = vadd.f32 %v319, %v403
  %v405 = vpop.f32.mrb[0].mxu0
  %v406 = vpop.f32.mrb[0].mxu0
  %v407 = vadd.f32 %v319, %v406
  %v408 = vpop.f32.mrb[0].mxu0
  %409 = vmatprep.mubr.bf16.mxu0 0
  %410 = vmatmul.mubr.bf16.gmra.mrb[0].mxu0 %v295
  %v411 = vpop.f32.mrb[0].mxu0
  %v412 = vadd.f32 %v319, %v411
  %v413 = vpop.f32.mrb[0].mxu0
  %v414 = vpop.f32.mrb[0].mxu0
  %v415 = vadd.f32 %v319, %v414
  %v416 = vpop.f32.mrb[0].mxu0
  %417 = vmatprep.mubr.bf16.mxu0 0
  %418 = vmatmul.mubr.bf16.gmra.mrb[0].mxu0 %v296
  %v419 = vpop.f32.mrb[0].mxu0
  %v420 = vadd.f32 %v319, %v419
  %v421 = vpop.f32.mrb[0].mxu0
  %v422 = vpop.f32.mrb[0].mxu0
  %v423 = vadd.f32 %v319, %v422
  %v424 = vpop.f32.mrb[0].mxu0
  %425 = vmatprep.mubr.bf16.mxu0 0
  %426 = vmatmul.mubr.bf16.gmra.mrb[0].mxu0 %v297
  %v427 = vpop.f32.mrb[0].mxu0
  %v428 = vadd.f32 %v319, %v427
  %v429 = vpop.f32.mrb[0].mxu0
  %v430 = vpop.f32.mrb[0].mxu0
  %v431 = vadd.f32 %v319, %v430
  %v432 = vpop.f32.mrb[0].mxu0
  %433 = vdwg.mxu0
  %v434 = vld [vmem:[%s7] sm:$0xf]
  %v435 = vld [vmem:[%s7 + $0x4] sm:$0xf]
  %v436 = vld [vmem:[%s7 + $0x8] sm:$0xf]
  %v437 = vld [vmem:[%s7 + $0xc] sm:$0xf]
  %v438 = vld [vmem:[%s7 + $0x10] sm:$0xf]
  %v439 = vld [vmem:[%s7 + $0x14] sm:$0xf]
  %v440 = vld [vmem:[%s7 + $0x18] sm:$0xf]
  %v441 = vld [vmem:[%s7 + $0x1c] sm:$0xf]
  %v442 = vld [vmem:[%s7 + $0x20] sm:$0xf]
  %v443 = vld [vmem:[%s7 + $0x24] sm:$0xf]
  %v444 = vld [vmem:[%s7 + $0x28] sm:$0xf]
  %v445 = vld [vmem:[%s7 + $0x2c] sm:$0xf]
  %v446 = vld [vmem:[%s7 + $0x30] sm:$0xf]
  %v447 = vld [vmem:[%s7 + $0x34] sm:$0xf]
  %v448 = vld [vmem:[%s7 + $0x38] sm:$0xf]
  %v449 = vld [vmem:[%s7 + $0x3c] sm:$0xf]
  %v450 = vld [vmem:[%s8] sm:$0x1]
  %v452 = vlaneseq
  %v453 = vshrl.u32 %v452, 7
  %v454 = vsub.s32 0, %v453
  %v455 = vrot.slane %v450, %v454
  %v473 = vunpack.c.l.b16 %v434
  %v474 = vunpack.c.l.b16 %v435
  %v475 = vunpack.c.l.b16 %v436
  %v476 = vunpack.c.l.b16 %v437
  %v477 = vunpack.c.l.b16 %v438
  %v478 = vunpack.c.l.b16 %v439
  %v479 = vunpack.c.l.b16 %v440
  %v480 = vunpack.c.l.b16 %v441
  %v481 = vunpack.c.l.b16 %v442
  %v482 = vunpack.c.l.b16 %v443
  %v483 = vunpack.c.l.b16 %v444
  %v484 = vunpack.c.l.b16 %v445
  %v485 = vunpack.c.l.b16 %v446
  %v486 = vunpack.c.l.b16 %v447
  %v487 = vunpack.c.l.b16 %v448
  %v488 = vunpack.c.l.b16 %v449
  %v489 = vpack.c.b16 %v474, %v473
  %v490 = vpack.c.b16 %v476, %v475
  %v491 = vpack.c.b16 %v478, %v477
  %v492 = vpack.c.b16 %v480, %v479
  %v493 = vpack.c.b16 %v482, %v481
  %v494 = vpack.c.b16 %v484, %v483
  %v495 = vpack.c.b16 %v486, %v485
  %v496 = vpack.c.b16 %v488, %v487
  %505 = vmatprep.subr.bf16.mxu0 0
  %506 = vmatpush1.bf16.msra.mxu0 %v489
  %507 = vmatprep.subr.bf16.mxu0 0
  %508 = vmatpush1.bf16.msra.mxu0 %v490
  %509 = vmatprep.subr.bf16.mxu0 0
  %510 = vmatpush1.bf16.msra.mxu0 %v491
  %511 = vmatprep.subr.bf16.mxu0 0
  %512 = vmatpush1.bf16.msra.mxu0 %v492
  %513 = vmatprep.subr.bf16.mxu0 0
  %514 = vmatpush1.bf16.msra.mxu0 %v493
  %515 = vmatprep.subr.bf16.mxu0 0
  %516 = vmatpush1.bf16.msra.mxu0 %v494
  %517 = vmatprep.subr.bf16.mxu0 0
  %518 = vmatpush1.bf16.msra.mxu0 %v495
  %519 = vmatprep.subr.bf16.mxu0 0
  %520 = vmatpush1.bf16.msra.mxu0 %v496
  %521 = vmatprep.subr.bf16.mxu0 0
  %522 = vmatpush1.bf16.msra.mxu0 0
  %523 = vmatprep.subr.bf16.mxu0 0
  %524 = vmatpush1.bf16.msra.mxu0 0
  %525 = vmatprep.subr.bf16.mxu0 0
  %526 = vmatpush1.bf16.msra.mxu0 0
  %527 = vmatprep.subr.bf16.mxu0 0
  %528 = vmatpush1.bf16.msra.mxu0 0
  %529 = vmatprep.subr.bf16.mxu0 0
  %530 = vmatpush1.bf16.msra.mxu0 0
  %531 = vmatprep.subr.bf16.mxu0 0
  %532 = vmatpush1.bf16.msra.mxu0 0
  %533 = vmatprep.subr.bf16.mxu0 0
  %534 = vmatpush1.bf16.msra.mxu0 0
  %535 = vmatprep.subr.bf16.mxu0 0
  %536 = vmatpush1.bf16.msra.mxu0 0
  %537 = vmatprep.mubr.bf16.mxu0 0
  %538 = vmatmul.mubr.bf16.gmra.mrb[0].mxu0 %v294
  %v539 = vpop.f32.mrb[0].mxu0
  %v540 = vadd.f32 %v455, %v539
  %v541 = vpop.f32.mrb[0].mxu0
  %v542 = vpop.f32.mrb[0].mxu0
  %v543 = vadd.f32 %v455, %v542
  %v544 = vpop.f32.mrb[0].mxu0
  %545 = vmatprep.mubr.bf16.mxu0 0
  %546 = vmatmul.mubr.bf16.gmra.mrb[0].mxu0 %v295
  %v547 = vpop.f32.mrb[0].mxu0
  %v548 = vadd.f32 %v455, %v547
  %v549 = vpop.f32.mrb[0].mxu0
  %v550 = vpop.f32.mrb[0].mxu0
  %v551 = vadd.f32 %v455, %v550
  %v552 = vpop.f32.mrb[0].mxu0
  %553 = vmatprep.mubr.bf16.mxu0 0
  %554 = vmatmul.mubr.bf16.gmra.mrb[0].mxu0 %v296
  %v555 = vpop.f32.mrb[0].mxu0
  %v556 = vadd.f32 %v455, %v555
  %v557 = vpop.f32.mrb[0].mxu0
  %v558 = vpop.f32.mrb[0].mxu0
  %v559 = vadd.f32 %v455, %v558
  %v560 = vpop.f32.mrb[0].mxu0
  %561 = vmatprep.mubr.bf16.mxu0 0
  %562 = vmatmul.mubr.bf16.gmra.mrb[0].mxu0 %v297
  %v563 = vpop.f32.mrb[0].mxu0
  %v564 = vadd.f32 %v455, %v563
  %v565 = vpop.f32.mrb[0].mxu0
  %v566 = vpop.f32.mrb[0].mxu0
  %v567 = vadd.f32 %v455, %v566
  %v568 = vpop.f32.mrb[0].mxu0
  %569 = vdwg.mxu0
  %v570 = vmax.f32 %v540, -20.0
  %v571 = vmax.f32 %v543, -20.0
  %v572 = vmax.f32 %v548, -20.0
  %v573 = vmax.f32 %v551, -20.0
  %v574 = vmax.f32 %v556, -20.0
  %v575 = vmax.f32 %v559, -20.0
  %v576 = vmax.f32 %v564, -20.0
  %v577 = vmax.f32 %v567, -20.0
  %v578 = vmin.f32 %v570, 2.0
  %v579 = vmin.f32 %v571, 2.0
  %v580 = vmin.f32 %v572, 2.0
  %v581 = vmin.f32 %v573, 2.0
  %v582 = vmin.f32 %v574, 2.0
  %v583 = vmin.f32 %v575, 2.0
  %v584 = vmin.f32 %v576, 2.0
  %v585 = vmin.f32 %v577, 2.0
  %v586 = vsub.f32 0.0, %v578
  %v587 = vsub.f32 0.0, %v579
  %v588 = vsub.f32 0.0, %v580
  %v589 = vsub.f32 0.0, %v581
  %v590 = vsub.f32 0.0, %v582
  %v591 = vsub.f32 0.0, %v583
  %v592 = vsub.f32 0.0, %v584
  %v593 = vsub.f32 0.0, %v585
  %v594 = vsub.f32 %v586, 0.9189385
  %v595 = vsub.f32 %v587, 0.9189385
  %v596 = vsub.f32 %v588, 0.9189385
  %v597 = vsub.f32 %v589, 0.9189385
  %v598 = vsub.f32 %v590, 0.9189385
  %v599 = vsub.f32 %v591, 0.9189385
  %v600 = vsub.f32 %v592, 0.9189385
  %v601 = vsub.f32 %v593, 0.9189385
  %v602 = vtanh.pop %v404
  %v603 = vtanh.pop %v407
  %v604 = vtanh.pop %v412
  %v605 = vtanh.pop %v415
  %v606 = vtanh.pop %v420
  %v607 = vtanh.pop %v423
  %v608 = vtanh.pop %v428
  %v609 = vtanh.pop %v431
  %v610 = vmul.f32 %v602, %v602
  %v611 = vmul.f32 %v603, %v603
  %v612 = vmul.f32 %v604, %v604
  %v613 = vmul.f32 %v605, %v605
  %v614 = vmul.f32 %v606, %v606
  %v615 = vmul.f32 %v607, %v607
  %v616 = vmul.f32 %v608, %v608
  %v617 = vmul.f32 %v609, %v609
  %v618 = vsub.f32 1.0, %v610
  %v619 = vsub.f32 1.0, %v611
  %v620 = vsub.f32 1.0, %v612
  %v621 = vsub.f32 1.0, %v613
  %v622 = vsub.f32 1.0, %v614
  %v623 = vsub.f32 1.0, %v615
  %v624 = vsub.f32 1.0, %v616
  %v625 = vsub.f32 1.0, %v617
  %v626 = vadd.f32 %v618, 1e-06
  %v627 = vadd.f32 %v619, 1e-06
  %v628 = vadd.f32 %v620, 1e-06
  %v629 = vadd.f32 %v621, 1e-06
  %v630 = vadd.f32 %v622, 1e-06
  %v631 = vadd.f32 %v623, 1e-06
  %v632 = vadd.f32 %v624, 1e-06
  %v633 = vadd.f32 %v625, 1e-06
  %v634 = vlog2.pop %v626
  %v635 = vmul.f32 %v634, 0.6931472
  %v636 = vlog2.pop %v627
  %v637 = vmul.f32 %v636, 0.6931472
  %v638 = vlog2.pop %v628
  %v639 = vmul.f32 %v638, 0.6931472
  %v640 = vlog2.pop %v629
  %v641 = vmul.f32 %v640, 0.6931472
  %v642 = vlog2.pop %v630
  %v643 = vmul.f32 %v642, 0.6931472
  %v644 = vlog2.pop %v631
  %v645 = vmul.f32 %v644, 0.6931472
  %v646 = vlog2.pop %v632
  %v647 = vmul.f32 %v646, 0.6931472
  %v648 = vlog2.pop %v633
  %v649 = vmul.f32 %v648, 0.6931472
  %v650 = vsub.f32 %v594, %v635
  %v651 = vsub.f32 %v595, %v637
  %v652 = vsub.f32 %v596, %v639
  %v653 = vsub.f32 %v597, %v641
  %v654 = vsub.f32 %v598, %v643
  %v655 = vsub.f32 %v599, %v645
  %v656 = vsub.f32 %v600, %v647
  %v657 = vsub.f32 %v601, %v649
  %vm658 = vcmask 31744
  %v659 = vsel %vm658, %v650, 0.0
  %660 = vadd.xlane.f32.xlu0 %v659
  %v661 = vpop.xlane.xlu0 %660
  %v662 = vsel %vm658, %v651, 0.0
  %663 = vadd.xlane.f32.xlu0 %v662
  %v664 = vpop.xlane.xlu0 %663
  %v665 = vsel %vm658, %v652, 0.0
  %666 = vadd.xlane.f32.xlu0 %v665
  %v667 = vpop.xlane.xlu0 %666
  %v668 = vsel %vm658, %v653, 0.0
  %669 = vadd.xlane.f32.xlu0 %v668
  %v670 = vpop.xlane.xlu0 %669
  %v671 = vsel %vm658, %v654, 0.0
  %672 = vadd.xlane.f32.xlu0 %v671
  %v673 = vpop.xlane.xlu0 %672
  %v674 = vsel %vm658, %v655, 0.0
  %675 = vadd.xlane.f32.xlu0 %v674
  %v676 = vpop.xlane.xlu0 %675
  %v677 = vsel %vm658, %v656, 0.0
  %678 = vadd.xlane.f32.xlu0 %v677
  %v679 = vpop.xlane.xlu0 %678
  %v680 = vsel %vm658, %v657, 0.0
  %681 = vadd.xlane.f32.xlu0 %v680
  %v682 = vpop.xlane.xlu0 %681
  %v683 = vsel %vm658, %v602, %v661
  %v684 = vsel %vm658, %v603, %v664
  %v685 = vsel %vm658, %v604, %v667
  %v686 = vsel %vm658, %v605, %v670
  %v687 = vsel %vm658, %v606, %v673
  %v688 = vsel %vm658, %v607, %v676
  %v689 = vsel %vm658, %v608, %v679
  %v690 = vsel %vm658, %v609, %v682
  %vm691 = vcmask 39936
  %v692 = vsel %vm691, %v683, 0.0
  %v693 = vsel %vm691, %v684, 0.0
  %v694 = vsel %vm691, %v685, 0.0
  %v695 = vsel %vm691, %v686, 0.0
  %v696 = vsel %vm691, %v687, 0.0
  %v697 = vsel %vm691, %v688, 0.0
  %v698 = vsel %vm691, %v689, 0.0
  %v699 = vsel %vm691, %v690, 0.0
  %vm700 = vcmask 64512
  %701 = vst.msk [vmem:[%s9] sm:$0xff] %vm700, %v692
  %702 = vst.msk [vmem:[%s9 + $0x8] sm:$0xff] %vm700, %v693
  %703 = vst.msk [vmem:[%s9 + $0x10] sm:$0xff] %vm700, %v694
  %704 = vst.msk [vmem:[%s9 + $0x18] sm:$0xff] %vm700, %v695
  %705 = vst.msk [vmem:[%s9 + $0x20] sm:$0xff] %vm700, %v696
  %706 = vst.msk [vmem:[%s9 + $0x28] sm:$0xff] %vm700, %v697
  %707 = vst.msk [vmem:[%s9 + $0x30] sm:$0xff] %vm700, %v698
  %708 = vst.msk [vmem:[%s9 + $0x38] sm:$0xff] %vm700, %v699
  // Predicated region
  $region38: #{tpu_custom_call.1} parent=0 // pred_check
    _
  $region39: #{tpu_custom_call.1} parent=0 // pred_check_branch
    %710 = sbr.rel (0) target = $region41
  $region40: #{tpu_custom_call.1} parent=0 // pred_region
    _
  $region41: #{tpu_custom_call.1} parent=0 // pred_fallthru
    _
  // Predicated region
  $region42: #{tpu_custom_call.1} parent=0 // pred_check
    _
  $region43: #{tpu_custom_call.1} parent=0 // pred_check_branch
    %712 = sbr.rel (0) target = $region45
  $region44: #{tpu_custom_call.1} parent=0 // pred_region
    _
  $region45: #{tpu_custom_call.1} parent=0 // pred_fallthru
    _

</llo_original>
